<compile_context>
chip_gen: v6e
topology: v6e:2x2x1
jax: 0.10.0
libtpu: 0.0.40
codegen_flags: <defaults>
</compile_context>

<pallas_src>
import functools

import jax
import jax.numpy as jnp
from jax.experimental import pallas as pl
from jax.experimental.pallas import tpu as pltpu


def attention_kernel(x_ref, w1_ref, b1_ref, w2_ref, b2_ref, e_ref, c_ref, o_ref,
                     *, seq_blocks):
    # x_ref: (R, L) lane-packed rows for TB batches; R = TB * seq_blocks, L = pack * D.
    # Packed weights are full arrays with a constant block index (resident in VMEM).
    R, L = x_ref.shape
    P = e_ref.shape[0]            # pack factor (sequence positions per packed row)
    D = c_ref.shape[1]            # original feature dim
    TB = R // seq_blocks          # batches in this block

    x2 = x_ref[...]                                              # (R, L), native dtype

    # --- Linear(D -> D) + Tanh: one dense (R,128)@(128,128) MXU matmul -------------
    h = jnp.tanh(
        jnp.dot(x2, w1_ref[...], preferred_element_type=jnp.float32)
        + b1_ref[...]
    )                                                             # (R, L) f32

    # --- Linear(D -> 1): per-position score via block-diagonal w2 on the MXU -------
    scores = (
        jnp.dot(h, w2_ref[...], preferred_element_type=jnp.float32)
        + b2_ref[...]
    )                                                             # (R, P) f32

    # Dropout(p=0.5) in eval mode == identity.

    # --- softmax over the sequence (dim=1 of the original (B, S, D) input) ---------
    s3 = scores.reshape(TB, seq_blocks, P)                        # tiny (R*P) repack
    m = jnp.max(jnp.max(s3, axis=2, keepdims=True), axis=1, keepdims=True)
    e = jnp.exp(s3 - m)
    denom = jnp.sum(jnp.sum(e, axis=2, keepdims=True), axis=1, keepdims=True)
    attn = e * pl.reciprocal(denom, approx=False)                 # (TB, seq_blocks, P)

    # --- weighted sum over the sequence ---------------------------------------------
    # Broadcast each position's weight across its D-lane segment with a tiny
    # (R, P)@(P, L) MXU matmul (avoids a cross-lane VPU/XLU expand).
    attn_exp = jnp.dot(attn.reshape(R, P), e_ref[...],
                       preferred_element_type=jnp.float32)        # (R, L)
    weighted = x2.astype(jnp.float32) * attn_exp                  # 1 VPU mul / element

    # Fold the P packed segments back to D features on the MXU first, so the
    # remaining per-batch sequence reduction (and its reshape) touch a pack-times
    # smaller array.
    wc = jnp.dot(weighted, c_ref[...], preferred_element_type=jnp.float32)  # (R, D)
    out = jnp.sum(wc.reshape(TB, seq_blocks, D), axis=1)          # (TB, D)

    o_ref[...] = out.astype(o_ref.dtype)


def _pick_tb(batch, batch_row_bytes, target_block_bytes):
    """Batches per grid step: byte-targeted, >=2 steps when possible, 8-aligned."""
    tb = max(1, int(target_block_bytes) // max(1, batch_row_bytes))
    tb = min(tb, batch)
    if batch > 1:
        tb = min(tb, -(-batch // 2))      # leave >=2 grid steps for megacore (v7x)
    if tb >= 8:
        tb -= tb % 8                      # sublane-aligned (tb, D) output blocks
    elif batch > 8:
        tb = 8
    else:
        tb = batch                        # tiny batch: one full block
    return tb


def attention_forward(x, w1, b1, w2, b2, *, target_block_bytes=None):
    """x: (B, S, D) -> (B, D). Matches Attention.forward in eval mode."""
    B, S, D = x.shape
    dtype = x.dtype
    itemsize = jnp.dtype(dtype).itemsize
    f32 = jnp.float32

    # ---- lane packing factor: fold `pack` positions into one 128-wide row ----------
    pack = 1
    if 0 < D <= 128 and 128 % D == 0:
        pack = 128 // D
        while pack > 1 and S % pack != 0:
            pack //= 2
    s_blk = S // pack                     # packed rows per sequence
    L = pack * D                          # packed lane width

    # Packed parameters (built once, outside the kernel; all tiny).
    eye_p = jnp.eye(pack, dtype=f32)
    w1_block = jnp.kron(eye_p, w1.T.astype(f32)).astype(dtype)    # (L, L)
    b1_tiled = jnp.tile(b1.astype(f32), pack).reshape(1, L)       # (1, L)
    w2_block = jnp.kron(eye_p, w2.T.astype(f32))                  # (L, pack)
    b2_mat = b2.astype(f32).reshape(1, 1)                         # (1, 1)
    expand = jnp.kron(eye_p, jnp.ones((1, D), f32))               # (pack, L)
    fold = jnp.tile(jnp.eye(D, dtype=f32), (pack, 1))             # (L, D)

    # ---- block sizing: multi-MiB x blocks, generation-aware VMEM -------------------
    try:
        vmem_cap = int(pltpu.get_tpu_info().vmem_capacity_bytes)
    except Exception:
        vmem_cap = 64 << 20                                       # conservative (v7x)
    if target_block_bytes is None:
        target_block_bytes = (8 << 20) if vmem_cap >= (96 << 20) else (4 << 20)

    batch_row_bytes = S * D * itemsize
    tb = _pick_tb(B, batch_row_bytes, target_block_bytes)
    num_blocks = -(-B // tb)
    if num_blocks > 1 and tb % 8 == 0:
        # spread the batch evenly over the grid (less zero padding)
        tb = ((-(-B // num_blocks) + 7) // 8) * 8
        num_blocks = -(-B // tb)
    Bp = num_blocks * tb

    x_rows = x.reshape(B, s_blk, L)                               # free reinterpretation
    if Bp != B:
        # Pad awkward batch sizes instead of shrinking tb to a divisor of B.
        x_rows = jnp.pad(x_rows, ((0, Bp - B), (0, 0), (0, 0)))
    x_rows = x_rows.reshape(Bp * s_blk, L)                        # still free (row-major)

    R = tb * s_blk                                                # x rows per grid step

    # VMEM budget: double-buffered x/out blocks + resident packed weights +
    # f32 intermediates (h, attn_exp, weighted, wc) for one block.
    block_bytes = R * L * itemsize
    f32_block = R * L * 4
    weight_bytes = L * L * itemsize + (L + L * pack + pack * L + L * D + 1) * 4
    vmem_need = (2 * block_bytes + 2 * tb * D * itemsize
                 + 2 * weight_bytes + 4 * f32_block + f32_block // 2)
    vmem_limit = int(min(max(vmem_need * 5 // 4, 16 << 20), (vmem_cap * 3) // 5))

    kernel = functools.partial(attention_kernel, seq_blocks=s_blk)

    out = pl.pallas_call(
        kernel,
        out_shape=jax.ShapeDtypeStruct((Bp, D), dtype),
        grid=(num_blocks,),
        in_specs=[
            pl.BlockSpec((R, L), lambda b: (b, 0)),               # packed x rows
            pl.BlockSpec((L, L), lambda b: (0, 0)),               # block-diag W1^T
            pl.BlockSpec((1, L), lambda b: (0, 0)),               # tiled b1
            pl.BlockSpec((L, pack), lambda b: (0, 0)),            # block-diag w2
            pl.BlockSpec((1, 1), lambda b: (0, 0)),               # b2
            pl.BlockSpec((pack, L), lambda b: (0, 0)),            # attn lane-expand
            pl.BlockSpec((L, D), lambda b: (0, 0)),               # segment fold
        ],
        out_specs=pl.BlockSpec((tb, D), lambda b: (b, 0)),
        compiler_params=pltpu.CompilerParams(
            dimension_semantics=("parallel",),
            vmem_limit_bytes=vmem_limit,
        ),
    )(x_rows, w1_block, b1_tiled, w2_block, b2_mat, expand, fold)

    return out[:B] if Bp != B else out


def attention_reference(x, w1, b1, w2, b2):
    """Pure-JAX reference mirroring the PyTorch forward (eval mode)."""
    h = jnp.tanh(jnp.einsum("bsd,ed->bse", x, w1) + b1)           # (B, S, D)
    scores = jnp.einsum("bsd,od->bso", h, w2) + b2                # (B, S, 1)
    attn = jax.nn.softmax(scores, axis=1)                         # softmax over seq
    return jnp.sum(x * attn, axis=1)                              # (B, D)


if __name__ == "__main__":
    B, S, D = 2, 8, 32

    key = jax.random.PRNGKey(0)
    kx, kw1, kb1, kw2, kb2 = jax.random.split(key, 5)

    # torch.nn.Linear default init: U(-1/sqrt(fan_in), 1/sqrt(fan_in)).
    bound = 1.0 / jnp.sqrt(jnp.float32(D))
    w1 = jax.random.uniform(kw1, (D, D), jnp.float32, -bound, bound)
    b1 = jax.random.uniform(kb1, (D,), jnp.float32, -bound, bound)
    w2 = jax.random.uniform(kw2, (1, D), jnp.float32, -bound, bound)
    b2 = jax.random.uniform(kb2, (1,), jnp.float32, -bound, bound)

    x = jax.random.normal(kx, (B, S, D), jnp.float32)

    out = attention_forward(x, w1, b1, w2, b2)
    out = jax.block_until_ready(out)

    ref = attention_reference(x, w1, b1, w2, b2)
    assert out.shape == (B, D)
    assert jnp.allclose(out, ref, atol=1e-5, rtol=1e-5), "mismatch vs reference"

    print("KERNEL_OK")
</pallas_src>

<mosaic_0001>
module attributes {stable_mosaic.version = 11 : i64} {
  func.func @attention_kernel(%arg0: i32, %arg1: memref<4x128xf32, #tpu.memory_space<vmem>>, %arg2: memref<128x128xf32, #tpu.memory_space<vmem>>, %arg3: memref<1x128xf32, #tpu.memory_space<vmem>>, %arg4: memref<128x4xf32, #tpu.memory_space<vmem>>, %arg5: memref<1x1xf32, #tpu.memory_space<vmem>>, %arg6: memref<4x128xf32, #tpu.memory_space<vmem>>, %arg7: memref<128x32xf32, #tpu.memory_space<vmem>>, %arg8: memref<2x32xf32, #tpu.memory_space<vmem>>) attributes {dimension_semantics = [#tpu.dimension_semantics<parallel>], iteration_bounds = array<i64: 1>, scalar_prefetch = 0 : i64, scratch_operands = 0 : i64, tpu.core_type = #tpu.core_type<tc>, window_params = [{transform_indices = @transform_0, window_bounds = array<i64: 4, 128>}, {pipeline_mode = #tpu.pipeline_mode<synchronous>, transform_indices = @transform_1, window_bounds = array<i64: 128, 128>}, {pipeline_mode = #tpu.pipeline_mode<synchronous>, transform_indices = @transform_2, window_bounds = array<i64: 1, 128>}, {pipeline_mode = #tpu.pipeline_mode<synchronous>, transform_indices = @transform_3, window_bounds = array<i64: 128, 4>}, {pipeline_mode = #tpu.pipeline_mode<synchronous>, transform_indices = @transform_4, window_bounds = array<i64: 1, 1>}, {pipeline_mode = #tpu.pipeline_mode<synchronous>, transform_indices = @transform_5, window_bounds = array<i64: 4, 128>}, {pipeline_mode = #tpu.pipeline_mode<synchronous>, transform_indices = @transform_6, window_bounds = array<i64: 128, 32>}, {transform_indices = @transform_7, window_bounds = array<i64: 2, 32>}]} {
    %c0 = arith.constant 0 : index
    %c0_0 = arith.constant 0 : index
    %0 = vector.load %arg1[%c0, %c0_0] : memref<4x128xf32, #tpu.memory_space<vmem>>, vector<4x128xf32>
    %c0_1 = arith.constant 0 : index
    %c0_2 = arith.constant 0 : index
    %1 = vector.load %arg2[%c0_1, %c0_2] : memref<128x128xf32, #tpu.memory_space<vmem>>, vector<128x128xf32>
    %cst = arith.constant dense<0.000000e+00> : vector<4x128xf32>
    %2 = tpu.matmul %0, %1, %cst {dimension_numbers = #tpu.dot_dimension_numbers<[1], [0], [0], [1], [0, 0, 1, 1], [], []>} : vector<4x128xf32>, vector<128x128xf32>, vector<4x128xf32> -> vector<4x128xf32>
    %c0_3 = arith.constant 0 : index
    %c0_4 = arith.constant 0 : index
    %3 = vector.load %arg3[%c0_3, %c0_4] : memref<1x128xf32, #tpu.memory_space<vmem>>, vector<1x128xf32>
    %4 = vector.broadcast %3 : vector<1x128xf32> to vector<4x128xf32>
    %5 = arith.addf %2, %4 : vector<4x128xf32>
    %6 = math.tanh %5 : vector<4x128xf32>
    %c0_5 = arith.constant 0 : index
    %c0_6 = arith.constant 0 : index
    %7 = vector.load %arg4[%c0_5, %c0_6] : memref<128x4xf32, #tpu.memory_space<vmem>>, vector<128x4xf32>
    %cst_7 = arith.constant dense<0.000000e+00> : vector<4x4xf32>
    %8 = tpu.matmul %6, %7, %cst_7 {dimension_numbers = #tpu.dot_dimension_numbers<[1], [0], [0], [1], [0, 0, 1, 1], [], []>} : vector<4x128xf32>, vector<128x4xf32>, vector<4x4xf32> -> vector<4x4xf32>
    %c0_8 = arith.constant 0 : index
    %c0_9 = arith.constant 0 : index
    %9 = vector.load %arg5[%c0_8, %c0_9] : memref<1x1xf32, #tpu.memory_space<vmem>>, vector<1x1xf32>
    %10 = vector.broadcast %9 : vector<1x1xf32> to vector<4x4xf32>
    %11 = arith.addf %8, %10 : vector<4x4xf32>
    %12 = vector.shape_cast %11 : vector<4x4xf32> to vector<2x2x4xf32>
    %cst_10 = arith.constant dense<0xFF800000> : vector<2x2xf32>
    %13 = vector.multi_reduction <maximumf>, %12, %cst_10 [2] : vector<2x2x4xf32> to vector<2x2xf32>
    %14 = vector.shape_cast %13 : vector<2x2xf32> to vector<2x2x1xf32>
    %cst_11 = arith.constant dense<0xFF800000> : vector<2x1xf32>
    %15 = vector.multi_reduction <maximumf>, %14, %cst_11 [1] : vector<2x2x1xf32> to vector<2x1xf32>
    %16 = vector.shape_cast %15 : vector<2x1xf32> to vector<2x1x1xf32>
    %17 = vector.broadcast %16 : vector<2x1x1xf32> to vector<2x2x4xf32>
    %18 = arith.subf %12, %17 : vector<2x2x4xf32>
    %19 = math.exp %18 : vector<2x2x4xf32>
    %cst_12 = arith.constant dense<0.000000e+00> : vector<2x2xf32>
    %20 = vector.multi_reduction <add>, %19, %cst_12 [2] : vector<2x2x4xf32> to vector<2x2xf32>
    %21 = vector.shape_cast %20 : vector<2x2xf32> to vector<2x2x1xf32>
    %cst_13 = arith.constant dense<0.000000e+00> : vector<2x1xf32>
    %22 = vector.multi_reduction <add>, %21, %cst_13 [1] : vector<2x2x1xf32> to vector<2x1xf32>
    %23 = vector.shape_cast %22 : vector<2x1xf32> to vector<2x1x1xf32>
    %24 = tpu.reciprocal %23 : vector<2x1x1xf32> -> vector<2x1x1xf32>
    %25 = vector.broadcast %24 : vector<2x1x1xf32> to vector<2x2x4xf32>
    %26 = arith.mulf %19, %25 : vector<2x2x4xf32>
    %27 = vector.shape_cast %26 : vector<2x2x4xf32> to vector<4x4xf32>
    %c0_14 = arith.constant 0 : index
    %c0_15 = arith.constant 0 : index
    %28 = vector.load %arg6[%c0_14, %c0_15] : memref<4x128xf32, #tpu.memory_space<vmem>>, vector<4x128xf32>
    %cst_16 = arith.constant dense<0.000000e+00> : vector<4x128xf32>
    %29 = tpu.matmul %27, %28, %cst_16 {dimension_numbers = #tpu.dot_dimension_numbers<[1], [0], [0], [1], [0, 0, 1, 1], [], []>} : vector<4x4xf32>, vector<4x128xf32>, vector<4x128xf32> -> vector<4x128xf32>
    %30 = arith.mulf %0, %29 : vector<4x128xf32>
    %c0_17 = arith.constant 0 : index
    %c0_18 = arith.constant 0 : index
    %31 = vector.load %arg7[%c0_17, %c0_18] : memref<128x32xf32, #tpu.memory_space<vmem>>, vector<128x32xf32>
    %cst_19 = arith.constant dense<0.000000e+00> : vector<4x32xf32>
    %32 = tpu.matmul %30, %31, %cst_19 {dimension_numbers = #tpu.dot_dimension_numbers<[1], [0], [0], [1], [0, 0, 1, 1], [], []>} : vector<4x128xf32>, vector<128x32xf32>, vector<4x32xf32> -> vector<4x32xf32>
    %33 = vector.shape_cast %32 : vector<4x32xf32> to vector<2x2x32xf32>
    %cst_20 = arith.constant dense<0.000000e+00> : vector<2x32xf32>
    %34 = vector.multi_reduction <add>, %33, %cst_20 [1] : vector<2x2x32xf32> to vector<2x32xf32>
    %c0_21 = arith.constant 0 : index
    %c0_22 = arith.constant 0 : index
    %35 = vector.load %arg8[%c0_21, %c0_22] : memref<2x32xf32, #tpu.memory_space<vmem>>, vector<2x32xf32>
    tpu.vector_store %arg8[%c0_21, %c0_22], %34 {strides = array<i32>} : memref<2x32xf32, #tpu.memory_space<vmem>>, vector<2x32xf32>,
    return
  }
  func.func @transform_0(%arg0: i32) -> (i32, i32) {
    %c0_i32 = arith.constant 0 : i32
    %c0_i32_0 = arith.constant 0 : i32
    return %arg0, %c0_i32 : i32, i32
  }
  func.func @transform_1(%arg0: i32) -> (i32, i32) {
    %c0_i32 = arith.constant 0 : i32
    %c0_i32_0 = arith.constant 0 : i32
    %c0_i32_1 = arith.constant 0 : i32
    return %c0_i32, %c0_i32_0 : i32, i32
  }
  func.func @transform_2(%arg0: i32) -> (i32, i32) {
    %c0_i32 = arith.constant 0 : i32
    %c0_i32_0 = arith.constant 0 : i32
    %c0_i32_1 = arith.constant 0 : i32
    return %c0_i32, %c0_i32_0 : i32, i32
  }
  func.func @transform_3(%arg0: i32) -> (i32, i32) {
    %c0_i32 = arith.constant 0 : i32
    %c0_i32_0 = arith.constant 0 : i32
    %c0_i32_1 = arith.constant 0 : i32
    return %c0_i32, %c0_i32_0 : i32, i32
  }
  func.func @transform_4(%arg0: i32) -> (i32, i32) {
    %c0_i32 = arith.constant 0 : i32
    %c0_i32_0 = arith.constant 0 : i32
    %c0_i32_1 = arith.constant 0 : i32
    return %c0_i32, %c0_i32_0 : i32, i32
  }
  func.func @transform_5(%arg0: i32) -> (i32, i32) {
    %c0_i32 = arith.constant 0 : i32
    %c0_i32_0 = arith.constant 0 : i32
    %c0_i32_1 = arith.constant 0 : i32
    return %c0_i32, %c0_i32_0 : i32, i32
  }
  func.func @transform_6(%arg0: i32) -> (i32, i32) {
    %c0_i32 = arith.constant 0 : i32
    %c0_i32_0 = arith.constant 0 : i32
    %c0_i32_1 = arith.constant 0 : i32
    return %c0_i32, %c0_i32_0 : i32, i32
  }
  func.func @transform_7(%arg0: i32) -> (i32, i32) {
    %c0_i32 = arith.constant 0 : i32
    %c0_i32_0 = arith.constant 0 : i32
    return %arg0, %c0_i32 : i32, i32
  }
}

</mosaic_0001>

<llo_original>
// kernel: tpu_custom_call.1
$region0: #{tpu_custom_call.1}
  #allocation0 [shape = 'u32[]', space=smem, size = 0x4, offset = 0x4, fixed_abs, tag = 'smem constant byte address 0x4 - core index']
  #allocation1 [shape = 'u32[144,128]{1,0:T(1,128)}', space=vmem, size = 0x12000, scoped, tag = 'internal scratch']
  #allocation2 [shape = 'f32[1,1]{1,0:T(1,128)S(1)}', space=vmem, size = 0x200, scoped, tag = 'scoped memory for tpu_custom_call.1']
  %s0 = inlined_call_operand.vmem [shape: f32[4,128], index: 0, kind: input, shape index: {}]
  %s1 = inlined_call_operand.vmem [shape: f32[128,128], index: 1, kind: input, shape index: {}]
  %s2 = inlined_call_operand.vmem [shape: f32[1,128], index: 2, kind: input, shape index: {}]
  %s3 = inlined_call_operand.vmem [shape: f32[128,4], index: 3, kind: input, shape index: {}]
  %s4 = inlined_call_operand.<no memory space> [shape: f32[1,1], index: 4, kind: input, shape index: {}]
  %s5 = inlined_call_operand.vmem [shape: f32[4,128], index: 5, kind: input, shape index: {}]
  %s6 = inlined_call_operand.vmem [shape: f32[128,32], index: 6, kind: input, shape index: {}]
  %s7 = inlined_call_operand.hbm [shape: f32[2,32], index: 7, kind: output, shape index: {}]
  %s8 = sld [smem:[#allocation0]]
  $region38: #{tpu_custom_call.1} parent=0
    _
  %s10 = ssub.s32 1, %s8
  %s11 = scalar_select 0, %s10, %s8
  %v12 = vstv %s4
  %13 = vst [vmem:[#allocation2] sm:$0x1] %v12
  $region1: #{tpu_custom_call.1} parent=0
    #allocation3 [shape = 'u8[1024]{0}', space=vmem, size = 0x400, scoped, tag = 'output window, operand 0, single buffered']
    #allocation4 [shape = 's32[1]{0}', space=sflag, size = 0x4, scoped, tag = 'scoped memory for tpu_custom_call.1']
    %14 = vsyncpa [#allocation4], 0
    // Predicated region
    $region2: #{tpu_custom_call.1} parent=1 // pred_check
      _
    $region3: #{tpu_custom_call.1} parent=1 // pred_check_branch
      %16 = sbr.rel (0) target = $region5
    $region4: #{tpu_custom_call.1} parent=1 // pred_region
      _
    $region5: #{tpu_custom_call.1} parent=1 // pred_fallthru
      _
    // Predicated region
    $region6: #{tpu_custom_call.1} parent=1 // pred_check
      _
    $region7: #{tpu_custom_call.1} parent=1 // pred_check_branch
      %18 = sbr.rel (0) target = $region9
    $region8: #{tpu_custom_call.1} parent=1 // pred_region
      _
    $region9: #{tpu_custom_call.1} parent=1 // pred_fallthru
      _
    // Predicated region
    $region10: #{tpu_custom_call.1} parent=1 // pred_check
      _
    $region11: #{tpu_custom_call.1} parent=1 // pred_check_branch
      %20 = sbr.rel (0) target = $region13
    $region12: #{tpu_custom_call.1} parent=1 // pred_region
      _
    $region13: #{tpu_custom_call.1} parent=1 // pred_fallthru
      _
    // Predicated region
    $region14: #{tpu_custom_call.1} parent=1 // pred_check
      _
    $region15: #{tpu_custom_call.1} parent=1 // pred_check_branch
      %22 = sbr.rel (0) target = $region17
    $region16: #{tpu_custom_call.1} parent=1 // pred_region
      _
    $region17: #{tpu_custom_call.1} parent=1 // pred_fallthru
      _
    // Predicated region
    $region18: #{tpu_custom_call.1} parent=1 // pred_check
      _
    $region19: #{tpu_custom_call.1} parent=1 // pred_check_branch
      %24 = sbr.rel (0) target = $region21
    $region20: #{tpu_custom_call.1} parent=1 // pred_region
      _
    $region21: #{tpu_custom_call.1} parent=1 // pred_fallthru
      _
    // Predicated region
    $region22: #{tpu_custom_call.1} parent=1 // pred_check
      _
    $region23: #{tpu_custom_call.1} parent=1 // pred_check_branch
      %26 = sbr.rel (0) target = $region25
    $region24: #{tpu_custom_call.1} parent=1 // pred_region
      _
    $region25: #{tpu_custom_call.1} parent=1 // pred_fallthru
      _
    // Predicated region
    $region26: #{tpu_custom_call.1} parent=1 // pred_check
      _
    $region27: #{tpu_custom_call.1} parent=1 // pred_check_branch
      %28 = sbr.rel (0) target = $region29
    $region28: #{tpu_custom_call.1} parent=1 // pred_region
      _
    $region29: #{tpu_custom_call.1} parent=1 // pred_fallthru
      _
    %v29 = vld [vmem:[%s0] sm:$0xf]
    %v30 = vld [vmem:[%s1] sm:$0xff]
    %v31 = vld [vmem:[%s1 + $0x8] sm:$0xff]
    %v32 = vld [vmem:[%s1 + $0x10] sm:$0xff]
    %v33 = vld [vmem:[%s1 + $0x18] sm:$0xff]
    %v34 = vld [vmem:[%s1 + $0x20] sm:$0xff]
    %v35 = vld [vmem:[%s1 + $0x28] sm:$0xff]
    %v36 = vld [vmem:[%s1 + $0x30] sm:$0xff]
    %v37 = vld [vmem:[%s1 + $0x38] sm:$0xff]
    %v38 = vld [vmem:[%s1 + $0x40] sm:$0xff]
    %v39 = vld [vmem:[%s1 + $0x48] sm:$0xff]
    %v40 = vld [vmem:[%s1 + $0x50] sm:$0xff]
    %v41 = vld [vmem:[%s1 + $0x58] sm:$0xff]
    %v42 = vld [vmem:[%s1 + $0x60] sm:$0xff]
    %v43 = vld [vmem:[%s1 + $0x68] sm:$0xff]
    %v44 = vld [vmem:[%s1 + $0x70] sm:$0xff]
    %v45 = vld [vmem:[%s1 + $0x78] sm:$0xff]
    %v46 = vld [vmem:[%s2] sm:$0x1]
    %v48 = vlaneseq
    %v49 = vshrl.u32 %v48, 7
    %v50 = vsub.s32 0, %v49
    %v51 = vrot.slane %v46, %v50
    %53 = vmatprep.subr.mxu0 0.0
    %54 = vmatpush1.msra.mxu0 %v45
    %55 = vmatprep.subr.mxu0 0.0
    %56 = vmatpush1.msra.mxu0 %v44
    %57 = vmatprep.subr.mxu0 0.0
    %58 = vmatpush1.msra.mxu0 %v43
    %59 = vmatprep.subr.mxu0 0.0
    %60 = vmatpush1.msra.mxu0 %v42
    %61 = vmatprep.subr.mxu0 0.0
    %62 = vmatpush1.msra.mxu0 %v41
    %63 = vmatprep.subr.mxu0 0.0
    %64 = vmatpush1.msra.mxu0 %v40
    %65 = vmatprep.subr.mxu0 0.0
    %66 = vmatpush1.msra.mxu0 %v39
    %67 = vmatprep.subr.mxu0 0.0
    %68 = vmatpush1.msra.mxu0 %v38
    %69 = vmatprep.subr.mxu0 0.0
    %70 = vmatpush1.msra.mxu0 %v37
    %71 = vmatprep.subr.mxu0 0.0
    %72 = vmatpush1.msra.mxu0 %v36
    %73 = vmatprep.subr.mxu0 0.0
    %74 = vmatpush1.msra.mxu0 %v35
    %75 = vmatprep.subr.mxu0 0.0
    %76 = vmatpush1.msra.mxu0 %v34
    %77 = vmatprep.subr.mxu0 0.0
    %78 = vmatpush1.msra.mxu0 %v33
    %79 = vmatprep.subr.mxu0 0.0
    %80 = vmatpush1.msra.mxu0 %v32
    %81 = vmatprep.subr.mxu0 0.0
    %82 = vmatpush1.msra.mxu0 %v31
    %83 = vmatprep.subr.mxu0 0.0
    %84 = vmatpush1.msra.mxu0 %v30
    %85 = vmatprep.subr.mxu0 0.0
    %86 = vmatpush2.msra.mxu0 0.0
    %87 = vmatprep.subr.mxu0 0.0
    %88 = vmatpush2.msra.mxu0 0.0
    %89 = vmatprep.subr.mxu0 0.0
    %90 = vmatpush2.msra.mxu0 0.0
    %91 = vmatprep.subr.mxu0 0.0
    %92 = vmatpush2.msra.mxu0 0.0
    %93 = vmatprep.subr.mxu0 0.0
    %94 = vmatpush2.msra.mxu0 0.0
    %95 = vmatprep.subr.mxu0 0.0
    %96 = vmatpush2.msra.mxu0 0.0
    %97 = vmatprep.subr.mxu0 0.0
    %98 = vmatpush2.msra.mxu0 0.0
    %99 = vmatprep.subr.mxu0 0.0
    %100 = vmatpush2.msra.mxu0 0.0
    %101 = vmatprep.subr.mxu0 0.0
    %102 = vmatpush2.msra.mxu0 0.0
    %103 = vmatprep.subr.mxu0 0.0
    %104 = vmatpush2.msra.mxu0 0.0
    %105 = vmatprep.subr.mxu0 0.0
    %106 = vmatpush2.msra.mxu0 0.0
    %107 = vmatprep.subr.mxu0 0.0
    %108 = vmatpush2.msra.mxu0 0.0
    %109 = vmatprep.subr.mxu0 0.0
    %110 = vmatpush2.msra.mxu0 0.0
    %111 = vmatprep.subr.mxu0 0.0
    %112 = vmatpush2.msra.mxu0 0.0
    %113 = vmatprep.subr.mxu0 0.0
    %114 = vmatpush2.msra.mxu0 0.0
    %115 = vmatprep.subr.mxu0 0.0
    %116 = vmatpush2.msra.mxu0 0.0
    %117 = vmatprep.mubr.f32.mxu0 0.0
    %118 = vmatmul.mubr.f32.gmra.mxu0 %v29
    %v119 = vpop.f32.mrf.mxu0
    %v120 = vadd.f32 %v51, %v119
    %v121 = vpop.f32.mrf.mxu0
    %122 = vdwg.mxu0
    %v123 = vtanh.pop %v120
    %v124 = vld [vmem:[%s3] sm:$0xff]
    %v125 = vld [vmem:[%s3 + $0x8] sm:$0xff]
    %v126 = vld [vmem:[%s3 + $0x10] sm:$0xff]
    %v127 = vld [vmem:[%s3 + $0x18] sm:$0xff]
    %v128 = vld [vmem:[%s3 + $0x20] sm:$0xff]
    %v129 = vld [vmem:[%s3 + $0x28] sm:$0xff]
    %v130 = vld [vmem:[%s3 + $0x30] sm:$0xff]
    %v131 = vld [vmem:[%s3 + $0x38] sm:$0xff]
    %v132 = vld [vmem:[%s3 + $0x40] sm:$0xff]
    %v133 = vld [vmem:[%s3 + $0x48] sm:$0xff]
    %v134 = vld [vmem:[%s3 + $0x50] sm:$0xff]
    %v135 = vld [vmem:[%s3 + $0x58] sm:$0xff]
    %v136 = vld [vmem:[%s3 + $0x60] sm:$0xff]
    %v137 = vld [vmem:[%s3 + $0x68] sm:$0xff]
    %v138 = vld [vmem:[%s3 + $0x70] sm:$0xff]
    %v139 = vld [vmem:[%s3 + $0x78] sm:$0xff]
    %v140 = vld [vmem:[#allocation2] sm:$0x1]
    %v142 = vlaneseq
    %v143 = vshrl.u32 %v142, 7
    %v144 = vsub.s32 0, %v143
    %v145 = vrot.slane %v140, %v144
    %146 = vset.pattern.permute.xlu0 0
    %147 = vperm.xlu0 %146, %v145
    %v148 = vpop.permute.xlu0 %147
    %150 = vmatprep.subr.mxu0 0.0
    %151 = vmatpush1.msra.mxu0 %v139
    %152 = vmatprep.subr.mxu0 0.0
    %153 = vmatpush1.msra.mxu0 %v138
    %154 = vmatprep.subr.mxu0 0.0
    %155 = vmatpush1.msra.mxu0 %v137
    %156 = vmatprep.subr.mxu0 0.0
    %157 = vmatpush1.msra.mxu0 %v136
    %158 = vmatprep.subr.mxu0 0.0
    %159 = vmatpush1.msra.mxu0 %v135
    %160 = vmatprep.subr.mxu0 0.0
    %161 = vmatpush1.msra.mxu0 %v134
    %162 = vmatprep.subr.mxu0 0.0
    %163 = vmatpush1.msra.mxu0 %v133
    %164 = vmatprep.subr.mxu0 0.0
    %165 = vmatpush1.msra.mxu0 %v132
    %166 = vmatprep.subr.mxu0 0.0
    %167 = vmatpush1.msra.mxu0 %v131
    %168 = vmatprep.subr.mxu0 0.0
    %169 = vmatpush1.msra.mxu0 %v130
    %170 = vmatprep.subr.mxu0 0.0
    %171 = vmatpush1.msra.mxu0 %v129
    %172 = vmatprep.subr.mxu0 0.0
    %173 = vmatpush1.msra.mxu0 %v128
    %174 = vmatprep.subr.mxu0 0.0
    %175 = vmatpush1.msra.mxu0 %v127
    %176 = vmatprep.subr.mxu0 0.0
    %177 = vmatpush1.msra.mxu0 %v126
    %178 = vmatprep.subr.mxu0 0.0
    %179 = vmatpush1.msra.mxu0 %v125
    %180 = vmatprep.subr.mxu0 0.0
    %181 = vmatpush1.msra.mxu0 %v124
    %182 = vmatprep.subr.mxu0 0.0
    %183 = vmatpush2.msra.mxu0 0.0
    %184 = vmatprep.subr.mxu0 0.0
    %185 = vmatpush2.msra.mxu0 0.0
    %186 = vmatprep.subr.mxu0 0.0
    %187 = vmatpush2.msra.mxu0 0.0
    %188 = vmatprep.subr.mxu0 0.0
    %189 = vmatpush2.msra.mxu0 0.0
    %190 = vmatprep.subr.mxu0 0.0
    %191 = vmatpush2.msra.mxu0 0.0
    %192 = vmatprep.subr.mxu0 0.0
    %193 = vmatpush2.msra.mxu0 0.0
    %194 = vmatprep.subr.mxu0 0.0
    %195 = vmatpush2.msra.mxu0 0.0
    %196 = vmatprep.subr.mxu0 0.0
    %197 = vmatpush2.msra.mxu0 0.0
    %198 = vmatprep.subr.mxu0 0.0
    %199 = vmatpush2.msra.mxu0 0.0
    %200 = vmatprep.subr.mxu0 0.0
    %201 = vmatpush2.msra.mxu0 0.0
    %202 = vmatprep.subr.mxu0 0.0
    %203 = vmatpush2.msra.mxu0 0.0
    %204 = vmatprep.subr.mxu0 0.0
    %205 = vmatpush2.msra.mxu0 0.0
    %206 = vmatprep.subr.mxu0 0.0
    %207 = vmatpush2.msra.mxu0 0.0
    %208 = vmatprep.subr.mxu0 0.0
    %209 = vmatpush2.msra.mxu0 0.0
    %210 = vmatprep.subr.mxu0 0.0
    %211 = vmatpush2.msra.mxu0 0.0
    %212 = vmatprep.subr.mxu0 0.0
    %213 = vmatpush2.msra.mxu0 0.0
    %214 = vmatprep.mubr.f32.mxu0 0.0
    %215 = vmatmul.mubr.f32.gmra.mxu0 %v123
    %v216 = vpop.f32.mrf.mxu0
    %v217 = vadd.f32 %v148, %v216
    %v218 = vpop.f32.mrf.mxu0
    %219 = vdwg.mxu0
    %v222 = vunpack.c.l.s4 1983009808
    %v223 = vunpack.c.0.s8 %v222
    %v224 = vlaneseq
    %v225 = vshrl.u32 %v224, 7
    %v226 = vsub.s32 %v223, %v225
    %v227 = vrot.slane %v217, %v226
    %v228 = vcombine.high %v227, %v227
    %vm231 = vcmask 25600
    %v232 = vsel %vm231, %v227, -inf
    %233 = vmax.xlane.f32.xlu0 %v232
    %v234 = vpop.xlane.xlu0 %233
    %v235 = vsel %vm231, %v228, -inf
    %236 = vmax.xlane.f32.xlu0 %v235
    %v237 = vpop.xlane.xlu0 %236
    %vm238 = vcmask 1041408
    %v239 = vsel %vm238, %v234, -inf
    %v240 = vrot.slane %v239, 4
    %v241 = vmax.f32 %v239, %v240
    %v242 = vrot.slane %v241, 2
    %v243 = vmax.f32 %v241, %v242
    %v244 = vrot.slane %v243, 1
    %v245 = vmax.f32 %v243, %v244
    %v246 = vsel %vm238, %v237, -inf
    %v247 = vrot.slane %v246, 4
    %v248 = vmax.f32 %v246, %v247
    %v249 = vrot.slane %v248, 2
    %v250 = vmax.f32 %v248, %v249
    %v251 = vrot.slane %v250, 1
    %v252 = vmax.f32 %v250, %v251
    %v253 = vsub.f32 %v227, %v245
    %v254 = vsub.f32 %v228, %v252
    %v255 = vmul.f32 %v253, 1.442695
    %v256 = vpow.pop %v255
    %v257 = vmul.f32 %v254, 1.442695
    %v258 = vpow.pop %v257
    %v259 = vsel %vm231, %v256, 0.0
    %260 = vadd.xlane.f32.xlu0 %v259
    %v261 = vpop.xlane.xlu0 %260
    %v262 = vsel %vm231, %v258, 0.0
    %263 = vadd.xlane.f32.xlu0 %v262
    %v264 = vpop.xlane.xlu0 %263
    %v265 = vsel %vm238, %v261, 0.0
    %v266 = vrot.slane %v265, 4
    %v267 = vadd.f32 %v265, %v266
    %v268 = vrot.slane %v267, 2
    %v269 = vadd.f32 %v267, %v268
    %v270 = vrot.slane %v269, 1
    %v271 = vadd.f32 %v269, %v270
    %v272 = vsel %vm238, %v264, 0.0
    %v273 = vrot.slane %v272, 4
    %v274 = vadd.f32 %v272, %v273
    %v275 = vrot.slane %v274, 2
    %v276 = vadd.f32 %v274, %v275
    %v277 = vrot.slane %v276, 1
    %v278 = vadd.f32 %v276, %v277
    %v279 = vrcp.pop %v271
    %v280 = vrcp.pop %v278
    %v281 = vmul.f32 %v256, %v279
    %v282 = vmul.f32 %v258, %v280
    %v283 = vld [vmem:[%s5] sm:$0xf]
    %v286 = vcombine.low %v281, %v282
    %v288 = vunpack.c.l.s4 1983009808
    %v289 = vunpack.c.0.s8 %v288
    %v290 = vlaneseq
    %v291 = vshrl.u32 %v290, 7
    %v292 = vsub.s32 %v289, %v291
    %v293 = vrot.slane %v286, %v292
    %vm294 = vcmask 31744
    %v295 = vsel %vm294, %v293, 0
    %vm297 = vcmask 1043456
    %v299 = vsel %vm297, %v283, 0
    %301 = vmatprep.subr.mxu0 0.0
    %302 = vmatpush1.msra.mxu0 0.0
    %303 = vmatprep.subr.mxu0 0.0
    %304 = vmatpush1.msra.mxu0 0.0
    %305 = vmatprep.subr.mxu0 0.0
    %306 = vmatpush1.msra.mxu0 0.0
    %307 = vmatprep.subr.mxu0 0.0
    %308 = vmatpush1.msra.mxu0 0.0
    %309 = vmatprep.subr.mxu0 0.0
    %310 = vmatpush1.msra.mxu0 0.0
    %311 = vmatprep.subr.mxu0 0.0
    %312 = vmatpush1.msra.mxu0 0.0
    %313 = vmatprep.subr.mxu0 0.0
    %314 = vmatpush1.msra.mxu0 0.0
    %315 = vmatprep.subr.mxu0 0.0
    %316 = vmatpush1.msra.mxu0 0.0
    %317 = vmatprep.subr.mxu0 0.0
    %318 = vmatpush1.msra.mxu0 0.0
    %319 = vmatprep.subr.mxu0 0.0
    %320 = vmatpush1.msra.mxu0 0.0
    %321 = vmatprep.subr.mxu0 0.0
    %322 = vmatpush1.msra.mxu0 0.0
    %323 = vmatprep.subr.mxu0 0.0
    %324 = vmatpush1.msra.mxu0 0.0
    %325 = vmatprep.subr.mxu0 0.0
    %326 = vmatpush1.msra.mxu0 0.0
    %327 = vmatprep.subr.mxu0 0.0
    %328 = vmatpush1.msra.mxu0 0.0
    %329 = vmatprep.subr.mxu0 0.0
    %330 = vmatpush1.msra.mxu0 0.0
    %331 = vmatprep.subr.mxu0 0.0
    %332 = vmatpush1.msra.mxu0 %v299
    %333 = vmatprep.subr.mxu0 0.0
    %334 = vmatpush2.msra.mxu0 0.0
    %335 = vmatprep.subr.mxu0 0.0
    %336 = vmatpush2.msra.mxu0 0.0
    %337 = vmatprep.subr.mxu0 0.0
    %338 = vmatpush2.msra.mxu0 0.0
    %339 = vmatprep.subr.mxu0 0.0
    %340 = vmatpush2.msra.mxu0 0.0
    %341 = vmatprep.subr.mxu0 0.0
    %342 = vmatpush2.msra.mxu0 0.0
    %343 = vmatprep.subr.mxu0 0.0
    %344 = vmatpush2.msra.mxu0 0.0
    %345 = vmatprep.subr.mxu0 0.0
    %346 = vmatpush2.msra.mxu0 0.0
    %347 = vmatprep.subr.mxu0 0.0
    %348 = vmatpush2.msra.mxu0 0.0
    %349 = vmatprep.subr.mxu0 0.0
    %350 = vmatpush2.msra.mxu0 0.0
    %351 = vmatprep.subr.mxu0 0.0
    %352 = vmatpush2.msra.mxu0 0.0
    %353 = vmatprep.subr.mxu0 0.0
    %354 = vmatpush2.msra.mxu0 0.0
    %355 = vmatprep.subr.mxu0 0.0
    %356 = vmatpush2.msra.mxu0 0.0
    %357 = vmatprep.subr.mxu0 0.0
    %358 = vmatpush2.msra.mxu0 0.0
    %359 = vmatprep.subr.mxu0 0.0
    %360 = vmatpush2.msra.mxu0 0.0
    %361 = vmatprep.subr.mxu0 0.0
    %362 = vmatpush2.msra.mxu0 0.0
    %363 = vmatprep.subr.mxu0 0.0
    %364 = vmatpush2.msra.mxu0 0.0
    %365 = vmatprep.mubr.f32.mxu0 0.0
    %366 = vmatmul.mubr.f32.gmra.mxu0 %v295
    %v367 = vpop.f32.mrf.mxu0
    %v368 = vadd.f32 0.0, %v367
    %v369 = vpop.f32.mrf.mxu0
    %370 = vdwg.mxu0
    %v371 = vmul.f32 %v29, %v368
    %v372 = vld [vmem:[%s6] sm:$0xff]
    %v373 = vld [vmem:[%s6 + $0x8] sm:$0xff]
    %v374 = vld [vmem:[%s6 + $0x10] sm:$0xff]
    %v375 = vld [vmem:[%s6 + $0x18] sm:$0xff]
    %v376 = vld [vmem:[%s6 + $0x20] sm:$0xff]
    %v377 = vld [vmem:[%s6 + $0x28] sm:$0xff]
    %v378 = vld [vmem:[%s6 + $0x30] sm:$0xff]
    %v379 = vld [vmem:[%s6 + $0x38] sm:$0xff]
    %v380 = vld [vmem:[%s6 + $0x40] sm:$0xff]
    %v381 = vld [vmem:[%s6 + $0x48] sm:$0xff]
    %v382 = vld [vmem:[%s6 + $0x50] sm:$0xff]
    %v383 = vld [vmem:[%s6 + $0x58] sm:$0xff]
    %v384 = vld [vmem:[%s6 + $0x60] sm:$0xff]
    %v385 = vld [vmem:[%s6 + $0x68] sm:$0xff]
    %v386 = vld [vmem:[%s6 + $0x70] sm:$0xff]
    %v387 = vld [vmem:[%s6 + $0x78] sm:$0xff]
    %388 = vmatprep.subr.mxu0 0.0
    %389 = vmatpush1.msra.mxu0 %v387
    %390 = vmatprep.subr.mxu0 0.0
    %391 = vmatpush1.msra.mxu0 %v386
    %392 = vmatprep.subr.mxu0 0.0
    %393 = vmatpush1.msra.mxu0 %v385
    %394 = vmatprep.subr.mxu0 0.0
    %395 = vmatpush1.msra.mxu0 %v384
    %396 = vmatprep.subr.mxu0 0.0
    %397 = vmatpush1.msra.mxu0 %v383
    %398 = vmatprep.subr.mxu0 0.0
    %399 = vmatpush1.msra.mxu0 %v382
    %400 = vmatprep.subr.mxu0 0.0
    %401 = vmatpush1.msra.mxu0 %v381
    %402 = vmatprep.subr.mxu0 0.0
    %403 = vmatpush1.msra.mxu0 %v380
    %404 = vmatprep.subr.mxu0 0.0
    %405 = vmatpush1.msra.mxu0 %v379
    %406 = vmatprep.subr.mxu0 0.0
    %407 = vmatpush1.msra.mxu0 %v378
    %408 = vmatprep.subr.mxu0 0.0
    %409 = vmatpush1.msra.mxu0 %v377
    %410 = vmatprep.subr.mxu0 0.0
    %411 = vmatpush1.msra.mxu0 %v376
    %412 = vmatprep.subr.mxu0 0.0
    %413 = vmatpush1.msra.mxu0 %v375
    %414 = vmatprep.subr.mxu0 0.0
    %415 = vmatpush1.msra.mxu0 %v374
    %416 = vmatprep.subr.mxu0 0.0
    %417 = vmatpush1.msra.mxu0 %v373
    %418 = vmatprep.subr.mxu0 0.0
    %419 = vmatpush1.msra.mxu0 %v372
    %420 = vmatprep.subr.mxu0 0.0
    %421 = vmatpush2.msra.mxu0 0.0
    %422 = vmatprep.subr.mxu0 0.0
    %423 = vmatpush2.msra.mxu0 0.0
    %424 = vmatprep.subr.mxu0 0.0
    %425 = vmatpush2.msra.mxu0 0.0
    %426 = vmatprep.subr.mxu0 0.0
    %427 = vmatpush2.msra.mxu0 0.0
    %428 = vmatprep.subr.mxu0 0.0
    %429 = vmatpush2.msra.mxu0 0.0
    %430 = vmatprep.subr.mxu0 0.0
    %431 = vmatpush2.msra.mxu0 0.0
    %432 = vmatprep.subr.mxu0 0.0
    %433 = vmatpush2.msra.mxu0 0.0
    %434 = vmatprep.subr.mxu0 0.0
    %435 = vmatpush2.msra.mxu0 0.0
    %436 = vmatprep.subr.mxu0 0.0
    %437 = vmatpush2.msra.mxu0 0.0
    %438 = vmatprep.subr.mxu0 0.0
    %439 = vmatpush2.msra.mxu0 0.0
    %440 = vmatprep.subr.mxu0 0.0
    %441 = vmatpush2.msra.mxu0 0.0
    %442 = vmatprep.subr.mxu0 0.0
    %443 = vmatpush2.msra.mxu0 0.0
    %444 = vmatprep.subr.mxu0 0.0
    %445 = vmatpush2.msra.mxu0 0.0
    %446 = vmatprep.subr.mxu0 0.0
    %447 = vmatpush2.msra.mxu0 0.0
    %448 = vmatprep.subr.mxu0 0.0
    %449 = vmatpush2.msra.mxu0 0.0
    %450 = vmatprep.subr.mxu0 0.0
    %451 = vmatpush2.msra.mxu0 0.0
    %452 = vmatprep.mubr.f32.mxu0 0.0
    %453 = vmatmul.mubr.f32.gmra.mxu0 %v371
    %v454 = vpop.f32.mrf.mxu0
    %v455 = vadd.f32 0.0, %v454
    %v456 = vpop.f32.mrf.mxu0
    %457 = vdwg.mxu0
    %v460 = vunpack.c.l.s4 1983009808
    %v461 = vunpack.c.0.s8 %v460
    %v462 = vlaneseq
    %v463 = vshrl.u32 %v462, 7
    %v464 = vsub.s32 %v461, %v463
    %v465 = vrot.slane %v455, %v464
    %v466 = vcombine.high %v465, %v465
    %vm469 = vcmask 254976
    %v470 = vsel %vm469, %v465, 0.0
    %v471 = vrot.slane %v470, 4
    %v472 = vadd.f32 %v470, %v471
    %v473 = vrot.slane %v472, 2
    %v474 = vadd.f32 %v472, %v473
    %v475 = vrot.slane %v474, 1
    %v476 = vadd.f32 %v474, %v475
    %v477 = vsel %vm469, %v466, 0.0
    %v478 = vrot.slane %v477, 4
    %v479 = vadd.f32 %v477, %v478
    %v480 = vrot.slane %v479, 2
    %v481 = vadd.f32 %v479, %v480
    %v482 = vrot.slane %v481, 1
    %v483 = vadd.f32 %v481, %v482
    %vm486 = vcmask 1041409
    %v487 = vsel %vm486, %v483, %v476
    %489 = vst.msk [vmem:[#allocation3] sm:$0x3] %vm469, %v487
    // Predicated region
    $region30: #{tpu_custom_call.1} parent=1 // pred_check
      _
    $region31: #{tpu_custom_call.1} parent=1 // pred_check_branch
      %491 = sbr.rel (0) target = $region33
    $region32: #{tpu_custom_call.1} parent=1 // pred_region
      %s493 = ssub.s32 32, 32
      %494 = vsyncadd [#allocation4], %s493
      %s496 = sshll.u32 [#allocation3], 4
      %s497 = int_to_ptr.vmem [resolvable:$true] %s496
      %499 = dma.vmem_to_hbm [thread:$0]  %s497, 32, %s7, [#allocation4]
    $region33: #{tpu_custom_call.1} parent=1 // pred_fallthru
      _
    // Predicated region
    $region34: #{tpu_custom_call.1} parent=1 // pred_check
      _
    $region35: #{tpu_custom_call.1} parent=1 // pred_check_branch
      %501 = sbr.rel (0) target = $region37
    $region36: #{tpu_custom_call.1} parent=1 // pred_region
      %502 = dma.done [#allocation4], 32
    $region37: #{tpu_custom_call.1} parent=1 // pred_fallthru
      _
    %503 = vsyncpa [#allocation4], 1

</llo_original>
